<compile_context>
chip_gen: v6e
topology: v6e:2x2x1
jax: 0.10.0
libtpu: 0.0.40
codegen_flags: <defaults>
</compile_context>

<pallas_src>
import jax
import jax.numpy as jnp
from jax.experimental import pallas as pl
from jax.experimental.pallas import tpu as pltpu

NEG_SLOPE = 0.01   # nn.LeakyReLU default
BN_EPS = 1e-5      # nn.BatchNorm1d default
KERNEL = 9
STRIDE = 4
PAD = 3


def _round_up(a, b):
    return (a + b - 1) // b * b


def make_downsample_params(conv_w, conv_b, bn_gamma, bn_beta, bn_mean, bn_var,
                           *, eps=BN_EPS):
    """Fold Conv1d bias + eval-mode BatchNorm1d(1) into 10 scalars (9 scaled taps + bias).

    Hoisted out of the per-call path: compute once per weight update and reuse across
    forward calls.  Assumes channel == 1 (required by BatchNorm1d(1) in the module)."""
    scale = (bn_gamma.reshape(()) / jnp.sqrt(bn_var.reshape(()) + eps)).astype(jnp.float32)
    shift = (bn_beta.reshape(()) - bn_mean.reshape(()) * scale).astype(jnp.float32)
    taps = conv_w.reshape(KERNEL).astype(jnp.float32) * scale              # (9,)
    b_eff = conv_b.reshape(()).astype(jnp.float32) * scale + shift         # ()
    coef = jnp.zeros((16,), jnp.float32)                                   # pad to 16 scalars
    coef = coef.at[:KERNEL].set(taps).at[KERNEL].set(b_eff)
    return coef


def downsample_kernel(xp_ref, coef_ref, o_ref):
    """xp_ref: (4, tm, L_out) stride-phase planes of x (VMEM, f32).
       coef_ref: (16,) folded scalars in SMEM (c0..c8 = BN-scaled conv taps, c9 = bias).
       o_ref: (tm, L_out) output tile."""
    x0 = xp_ref[0].astype(jnp.float32)
    x1 = xp_ref[1].astype(jnp.float32)
    x2 = xp_ref[2].astype(jnp.float32)
    x3 = xp_ref[3].astype(jnp.float32)
    zcol = jnp.zeros_like(x0[:, :1])

    def prev(v):   # v[:, j-1], zero at j == 0        (left conv zero-padding)
        return jnp.concatenate([zcol, v[:, :-1]], axis=1)

    def nxt(v):    # v[:, j+1], zero at j == L_out-1  (right conv zero-padding)
        return jnp.concatenate([v[:, 1:], zcol], axis=1)

    # Nine VPU multiply-adds (the exact 9-tap band) + fused bias.
    y = (coef_ref[3] * x0 + coef_ref[4] * x1 + coef_ref[5] * x2 + coef_ref[6] * x3
         + coef_ref[0] * prev(x1) + coef_ref[1] * prev(x2) + coef_ref[2] * prev(x3)
         + coef_ref[7] * nxt(x0) + coef_ref[8] * nxt(x1)
         + coef_ref[KERNEL])
    # LeakyReLU epilogue (kept f32: correct for v5e's VPU as well), then cast to out dtype.
    o_ref[...] = jnp.where(y > 0, y, NEG_SLOPE * y).astype(o_ref.dtype)


def downsample_forward(x, coef, *, tm=512, out_dtype=jnp.float32):
    """x: (B, L) float (the module views it as (B, channel=1, L)).
       coef: (16,) from make_downsample_params (computed once per weight update).
       Returns LeakyReLU(BatchNorm(Conv1d(k=9, s=4, p=3)(x))) flattened to (B, L_out)."""
    B, L = x.shape
    if L % STRIDE != 0:
        # TODO(synk): general L (pad to a multiple of 4 and mask the tail phase column).
        raise ValueError("downsample_forward requires L % 4 == 0")
    L_out = L // STRIDE          # == (L + 2*PAD - KERNEL)//STRIDE + 1 when L % 4 == 0

    # Free reshape + ONE transpose pass: expose the 4 stride-phases as lane-dense
    # (B, L_out) planes.  This is the only wrapper pass over x (no cast, no padding),
    # and it removes the dense weight matrix / weight HBM stream entirely.
    xp = jnp.transpose(x.reshape(B, L_out, STRIDE), (2, 0, 1))   # (4, B, L_out)

    # Batch-only tiling: large tiles amortize the ~0.35 us per-grid-step overhead; clamp so
    # small batches don't allocate oversized blocks; ragged last tile handled by cdiv
    # (OOB rows read garbage and their writes are dropped -- rows are independent).
    tm_eff = min(tm, _round_up(B, 8))
    grid_m = pl.cdiv(B, tm_eff)

    out_bytes = jnp.dtype(out_dtype).itemsize
    in_bytes = x.dtype.itemsize
    # Double-buffered in/out tiles + headroom for the shifted-stream temporaries.
    need = (2 * (4 * tm_eff * L_out * in_bytes + tm_eff * L_out * out_bytes)
            + 10 * tm_eff * L_out * 4)
    vmem_limit = int(min(max(2 * need, 16 * 1024 * 1024), 48 * 1024 * 1024))

    cost = pl.CostEstimate(
        flops=2 * KERNEL * B * L_out,            # true conv MACs (no densification)
        transcendentals=0,
        bytes_accessed=B * L * in_bytes + B * L_out * out_bytes + coef.size * 4)

    return pl.pallas_call(
        downsample_kernel,
        out_shape=jax.ShapeDtypeStruct((B, L_out), out_dtype),
        grid_spec=pltpu.PrefetchScalarGridSpec(
            num_scalar_prefetch=0,
            grid=(grid_m,),
            in_specs=[
                pl.BlockSpec((4, tm_eff, L_out), lambda m: (0, m, 0)),   # phase planes of x
                pl.BlockSpec(memory_space=pltpu.MemorySpace.SMEM),       # 10 folded scalars
            ],
            out_specs=pl.BlockSpec((tm_eff, L_out), lambda m: (m, 0)),
        ),
        compiler_params=pltpu.CompilerParams(
            dimension_semantics=("parallel",),
            vmem_limit_bytes=vmem_limit),
        cost_estimate=cost,
    )(xp, coef)


if __name__ == "__main__":
    B = 8
    channel = 1          # BatchNorm1d(1) in the module forces channel == 1
    seq_length = 512     # stride-4 conv -> L_out = 128 (lane-dense output)

    key = jax.random.PRNGKey(0)
    kx, kw, kb, kg, kbe, km, kv = jax.random.split(key, 7)

    x = jax.random.normal(kx, (B, seq_length), dtype=jnp.float32)
    conv_w = 0.1 * jax.random.normal(kw, (channel, channel, KERNEL), dtype=jnp.float32)
    conv_b = 0.1 * jax.random.normal(kb, (channel,), dtype=jnp.float32)
    bn_gamma = 1.0 + 0.1 * jax.random.normal(kg, (1,), dtype=jnp.float32)
    bn_beta = 0.1 * jax.random.normal(kbe, (1,), dtype=jnp.float32)
    bn_mean = 0.1 * jax.random.normal(km, (1,), dtype=jnp.float32)
    bn_var = 1.0 + 0.1 * jnp.abs(jax.random.normal(kv, (1,), dtype=jnp.float32))

    # Parameter folding is hoisted out of the forward path (computed once per weight update).
    coef = make_downsample_params(conv_w, conv_b, bn_gamma, bn_beta, bn_mean, bn_var)

    fwd = jax.jit(downsample_forward)
    out = fwd(x, coef)
    jax.block_until_ready(out)

    # Pure-JAX reference of the module's forward (eval-mode BatchNorm).
    lhs = x.reshape(B, channel, seq_length)
    conv = jax.lax.conv_general_dilated(
        lhs, conv_w, window_strides=(STRIDE,), padding=[(PAD, PAD)],
        dimension_numbers=("NCW", "OIW", "NCW")) + conv_b.reshape(1, channel, 1)
    scale = bn_gamma / jnp.sqrt(bn_var + BN_EPS)
    bn = (conv - bn_mean) * scale + bn_beta
    ref = jnp.where(bn > 0, bn, NEG_SLOPE * bn).reshape(B, -1)

    assert out.shape == ref.shape == (B, seq_length // STRIDE)
    # All-f32 banded formulation -> tight tolerance (no bf16 MXU operands anymore).
    assert jnp.allclose(out, ref, atol=1e-5, rtol=1e-5)

    print("KERNEL_OK")
</pallas_src>

<mosaic_0001>
module attributes {stable_mosaic.version = 11 : i64} {
  func.func @downsample_kernel(%arg0: i32, %arg1: memref<4x8x128xf32, #tpu.memory_space<vmem>>, %arg2: memref<16xf32, #tpu.memory_space<smem>>, %arg3: memref<8x128xf32, #tpu.memory_space<vmem>>) attributes {dimension_semantics = [#tpu.dimension_semantics<parallel>], iteration_bounds = array<i64: 1>, scalar_prefetch = 0 : i64, scratch_operands = 0 : i64, tpu.core_type = #tpu.core_type<tc>, window_params = [{transform_indices = @transform_0, window_bounds = array<i64: 4, 8, 128>}, {transform_indices = @transform_1, window_bounds = array<i64: 16>}, {transform_indices = @transform_2, window_bounds = array<i64: 8, 128>}]} {
    %c0 = arith.constant 0 : index
    %c0_0 = arith.constant 0 : index
    %c0_1 = arith.constant 0 : index
    %0 = vector.load %arg1[%c0, %c0_0, %c0_1] : memref<4x8x128xf32, #tpu.memory_space<vmem>>, vector<1x8x128xf32>
    %1 = vector.shape_cast %0 : vector<1x8x128xf32> to vector<8x128xf32>
    %c1 = arith.constant 1 : index
    %c0_2 = arith.constant 0 : index
    %c0_3 = arith.constant 0 : index
    %2 = vector.load %arg1[%c1, %c0_2, %c0_3] : memref<4x8x128xf32, #tpu.memory_space<vmem>>, vector<1x8x128xf32>
    %3 = vector.shape_cast %2 : vector<1x8x128xf32> to vector<8x128xf32>
    %c2 = arith.constant 2 : index
    %c0_4 = arith.constant 0 : index
    %c0_5 = arith.constant 0 : index
    %4 = vector.load %arg1[%c2, %c0_4, %c0_5] : memref<4x8x128xf32, #tpu.memory_space<vmem>>, vector<1x8x128xf32>
    %5 = vector.shape_cast %4 : vector<1x8x128xf32> to vector<8x128xf32>
    %c3 = arith.constant 3 : index
    %c0_6 = arith.constant 0 : index
    %c0_7 = arith.constant 0 : index
    %6 = vector.load %arg1[%c3, %c0_6, %c0_7] : memref<4x8x128xf32, #tpu.memory_space<vmem>>, vector<1x8x128xf32>
    %7 = vector.shape_cast %6 : vector<1x8x128xf32> to vector<8x128xf32>
    %cst = arith.constant 0.000000e+00 : f32
    %8 = vector.broadcast %cst : f32 to vector<8x1xf32>
    %c3_8 = arith.constant 3 : index
    %9 = memref.load %arg2[%c3_8] : memref<16xf32, #tpu.memory_space<smem>>
    %10 = vector.broadcast %9 : f32 to vector<8x128xf32>
    %11 = arith.mulf %10, %1 : vector<8x128xf32>
    %c4 = arith.constant 4 : index
    %12 = memref.load %arg2[%c4] : memref<16xf32, #tpu.memory_space<smem>>
    %13 = vector.broadcast %12 : f32 to vector<8x128xf32>
    %14 = arith.mulf %13, %3 : vector<8x128xf32>
    %15 = arith.addf %11, %14 : vector<8x128xf32>
    %c5 = arith.constant 5 : index
    %16 = memref.load %arg2[%c5] : memref<16xf32, #tpu.memory_space<smem>>
    %17 = vector.broadcast %16 : f32 to vector<8x128xf32>
    %18 = arith.mulf %17, %5 : vector<8x128xf32>
    %19 = arith.addf %15, %18 : vector<8x128xf32>
    %c6 = arith.constant 6 : index
    %20 = memref.load %arg2[%c6] : memref<16xf32, #tpu.memory_space<smem>>
    %21 = vector.broadcast %20 : f32 to vector<8x128xf32>
    %22 = arith.mulf %21, %7 : vector<8x128xf32>
    %23 = arith.addf %19, %22 : vector<8x128xf32>
    %c0_9 = arith.constant 0 : index
    %24 = memref.load %arg2[%c0_9] : memref<16xf32, #tpu.memory_space<smem>>
    %25 = vector.extract_strided_slice %3 {offsets = [0, 0], sizes = [8, 127], strides = [1, 1]} : vector<8x128xf32> to vector<8x127xf32>
    %26 = tpu.concatenate %8, %25 in 1 : vector<8x1xf32>, vector<8x127xf32> -> vector<8x128xf32>
    %27 = vector.broadcast %24 : f32 to vector<8x128xf32>
    %28 = arith.mulf %27, %26 : vector<8x128xf32>
    %29 = arith.addf %23, %28 : vector<8x128xf32>
    %c1_10 = arith.constant 1 : index
    %30 = memref.load %arg2[%c1_10] : memref<16xf32, #tpu.memory_space<smem>>
    %31 = vector.extract_strided_slice %5 {offsets = [0, 0], sizes = [8, 127], strides = [1, 1]} : vector<8x128xf32> to vector<8x127xf32>
    %32 = tpu.concatenate %8, %31 in 1 : vector<8x1xf32>, vector<8x127xf32> -> vector<8x128xf32>
    %33 = vector.broadcast %30 : f32 to vector<8x128xf32>
    %34 = arith.mulf %33, %32 : vector<8x128xf32>
    %35 = arith.addf %29, %34 : vector<8x128xf32>
    %c2_11 = arith.constant 2 : index
    %36 = memref.load %arg2[%c2_11] : memref<16xf32, #tpu.memory_space<smem>>
    %37 = vector.extract_strided_slice %7 {offsets = [0, 0], sizes = [8, 127], strides = [1, 1]} : vector<8x128xf32> to vector<8x127xf32>
    %38 = tpu.concatenate %8, %37 in 1 : vector<8x1xf32>, vector<8x127xf32> -> vector<8x128xf32>
    %39 = vector.broadcast %36 : f32 to vector<8x128xf32>
    %40 = arith.mulf %39, %38 : vector<8x128xf32>
    %41 = arith.addf %35, %40 : vector<8x128xf32>
    %c7 = arith.constant 7 : index
    %42 = memref.load %arg2[%c7] : memref<16xf32, #tpu.memory_space<smem>>
    %43 = vector.extract_strided_slice %1 {offsets = [0, 1], sizes = [8, 127], strides = [1, 1]} : vector<8x128xf32> to vector<8x127xf32>
    %44 = tpu.concatenate %43, %8 in 1 : vector<8x127xf32>, vector<8x1xf32> -> vector<8x128xf32>
    %45 = vector.broadcast %42 : f32 to vector<8x128xf32>
    %46 = arith.mulf %45, %44 : vector<8x128xf32>
    %47 = arith.addf %41, %46 : vector<8x128xf32>
    %c8 = arith.constant 8 : index
    %48 = memref.load %arg2[%c8] : memref<16xf32, #tpu.memory_space<smem>>
    %49 = vector.extract_strided_slice %3 {offsets = [0, 1], sizes = [8, 127], strides = [1, 1]} : vector<8x128xf32> to vector<8x127xf32>
    %50 = tpu.concatenate %49, %8 in 1 : vector<8x127xf32>, vector<8x1xf32> -> vector<8x128xf32>
    %51 = vector.broadcast %48 : f32 to vector<8x128xf32>
    %52 = arith.mulf %51, %50 : vector<8x128xf32>
    %53 = arith.addf %47, %52 : vector<8x128xf32>
    %c9 = arith.constant 9 : index
    %54 = memref.load %arg2[%c9] : memref<16xf32, #tpu.memory_space<smem>>
    %55 = vector.broadcast %54 : f32 to vector<8x128xf32>
    %56 = arith.addf %53, %55 : vector<8x128xf32>
    %cst_12 = arith.constant 0.000000e+00 : f32
    %57 = vector.broadcast %cst_12 : f32 to vector<8x128xf32>
    %58 = arith.cmpf ogt, %56, %57 : vector<8x128xf32>
    %cst_13 = arith.constant 0.00999999977 : f32
    %59 = vector.broadcast %cst_13 : f32 to vector<8x128xf32>
    %60 = arith.mulf %59, %56 : vector<8x128xf32>
    %61 = arith.select %58, %56, %60 : vector<8x128xi1>, vector<8x128xf32>
    %c0_14 = arith.constant 0 : index
    %c0_15 = arith.constant 0 : index
    %62 = vector.load %arg3[%c0_14, %c0_15] : memref<8x128xf32, #tpu.memory_space<vmem>>, vector<8x128xf32>
    tpu.vector_store %arg3[%c0_14, %c0_15], %61 {strides = array<i32>} : memref<8x128xf32, #tpu.memory_space<vmem>>, vector<8x128xf32>,
    return
  }
  func.func @transform_0(%arg0: i32) -> (i32, i32, i32) {
    %c0_i32 = arith.constant 0 : i32
    %c0_i32_0 = arith.constant 0 : i32
    %c0_i32_1 = arith.constant 0 : i32
    return %c0_i32, %arg0, %c0_i32_0 : i32, i32, i32
  }
  func.func @transform_1(%arg0: i32) -> i32 {
    %c0_i32 = arith.constant 0 : i32
    %c0_i32_0 = arith.constant 0 : i32
    return %c0_i32 : i32
  }
  func.func @transform_2(%arg0: i32) -> (i32, i32) {
    %c0_i32 = arith.constant 0 : i32
    %c0_i32_0 = arith.constant 0 : i32
    return %arg0, %c0_i32 : i32, i32
  }
}

</mosaic_0001>

<llo_original>
// kernel: downsample_forward.1
$region0: #{downsample_forward.1}
  #allocation0 [shape = 'u32[]', space=smem, size = 0x4, offset = 0x4, fixed_abs, tag = 'smem constant byte address 0x4 - core index']
  #allocation1 [shape = 'u32[144,128]{1,0:T(1,128)}', space=vmem, size = 0x12000, scoped, tag = 'internal scratch']
  %s0 = inlined_call_operand.vmem [shape: f32[4,8,128], index: 0, kind: input, shape index: {}]
  %s1 = inlined_call_operand.vmem [shape: f32[16], index: 1, kind: input, shape index: {}]
  %s2 = inlined_call_operand.hbm [shape: f32[8,128], index: 2, kind: output, shape index: {}]
  %s3 = sld [smem:[#allocation0]]
  $region22: #{downsample_forward.1} parent=0
    _
  %s5 = ssub.s32 1, %s3
  %s6 = scalar_select 0, %s5, %s3
  $region1: #{downsample_forward.1} parent=0
    #allocation2 [shape = 'u8[512]{0}', space=smem, size = 0x200, scoped, tag = 'input window, operand 1, single buffered']
    #allocation3 [shape = 's32[1]{0}', space=sflag, size = 0x4, scoped, tag = 'scoped memory for downsample_forward.1']
    #allocation4 [shape = 's32[1]{0}', space=sflag, size = 0x4, scoped, tag = 'scoped memory for downsample_forward.1']
    #allocation5 [shape = 'u8[4096]{0}', space=vmem, size = 0x1000, scoped, tag = 'output window, operand 0, single buffered']
    %7 = vsyncpa [#allocation4], 0
    %8 = vsyncpa [#allocation3], 0
    // Predicated region
    $region2: #{downsample_forward.1} parent=1 // pred_check
      _
    $region3: #{downsample_forward.1} parent=1 // pred_check_branch
      %10 = sbr.rel (0) target = $region5
    $region4: #{downsample_forward.1} parent=1 // pred_region
      _
    $region5: #{downsample_forward.1} parent=1 // pred_fallthru
      _
    // Predicated region
    $region6: #{downsample_forward.1} parent=1 // pred_check
      _
    $region7: #{downsample_forward.1} parent=1 // pred_check_branch
      %12 = sbr.rel (0) target = $region9
    $region8: #{downsample_forward.1} parent=1 // pred_region
      %s14 = ssub.s32 16, 16
      %15 = vsyncadd [#allocation4], %s14
      %s17 = sshll.u32 %s1, 4
      %s18 = int_to_ptr.vmem [resolvable:$true] %s17
      %20 = dma.vmem_to_smem %s18, 16, [#allocation2], [#allocation4]
    $region9: #{downsample_forward.1} parent=1 // pred_fallthru
      _
    // Predicated region
    $region10: #{downsample_forward.1} parent=1 // pred_check
      _
    $region11: #{downsample_forward.1} parent=1 // pred_check_branch
      %22 = sbr.rel (0) target = $region13
    $region12: #{downsample_forward.1} parent=1 // pred_region
      %23 = dma.done [#allocation4], 16
    $region13: #{downsample_forward.1} parent=1 // pred_fallthru
      _
    %24 = sfence
    %v25 = vld [vmem:[%s0] sm:$0xff]
    %s26 = scalar_lea.vmem %s0, 8
    %v27 = vld [vmem:[%s26] sm:$0xff]
    %s28 = scalar_lea.vmem %s0, 16
    %v29 = vld [vmem:[%s28] sm:$0xff]
    %s30 = scalar_lea.vmem %s0, 24
    %v31 = vld [vmem:[%s30] sm:$0xff]
    %s32 = sld [smem:[#allocation2 + $0x3]]
    %v33 = vstv %s32
    %v34 = vmul.f32 %v33, %v25
    %s35 = sld [smem:[#allocation2 + $0x4]]
    %v36 = vstv %s35
    %v37 = vmul.f32 %v36, %v27
    %v38 = vadd.f32 %v34, %v37
    %s39 = sld [smem:[#allocation2 + $0x5]]
    %v40 = vstv %s39
    %v41 = vmul.f32 %v40, %v29
    %v42 = vadd.f32 %v38, %v41
    %s43 = sld [smem:[#allocation2 + $0x6]]
    %v44 = vstv %s43
    %v45 = vmul.f32 %v44, %v31
    %v46 = vadd.f32 %v42, %v45
    %s47 = sld [smem:[#allocation2]]
    %49 = vrot.lane.b32.xlu0 %v27, 1
    %v50 = vpop.permute.xlu0 %49
    %vm52 = vcmask 7168
    %v53 = vsel %vm52, 0.0, %v50
    %v54 = vstv %s47
    %v55 = vmul.f32 %v54, %v53
    %v56 = vadd.f32 %v46, %v55
    %s57 = sld [smem:[#allocation2 + $0x1]]
    %59 = vrot.lane.b32.xlu0 %v29, 1
    %v60 = vpop.permute.xlu0 %59
    %v62 = vsel %vm52, 0.0, %v60
    %v63 = vstv %s57
    %v64 = vmul.f32 %v63, %v62
    %v65 = vadd.f32 %v56, %v64
    %s66 = sld [smem:[#allocation2 + $0x2]]
    %68 = vrot.lane.b32.xlu0 %v31, 1
    %v69 = vpop.permute.xlu0 %68
    %v71 = vsel %vm52, 0.0, %v69
    %v72 = vstv %s66
    %v73 = vmul.f32 %v72, %v71
    %v74 = vadd.f32 %v65, %v73
    %s75 = sld [smem:[#allocation2 + $0x7]]
    %77 = vrot.lane.b32.xlu0 %v25, 127
    %v78 = vpop.permute.xlu0 %77
    %vm80 = vcmask 1039360
    %v81 = vsel %vm80, %v78, 0.0
    %v82 = vstv %s75
    %v83 = vmul.f32 %v82, %v81
    %v84 = vadd.f32 %v74, %v83
    %s85 = sld [smem:[#allocation2 + $0x8]]
    %86 = vrot.lane.b32.xlu0 %v27, 127
    %v87 = vpop.permute.xlu0 %86
    %v89 = vsel %vm80, %v87, 0.0
    %v90 = vstv %s85
    %v91 = vmul.f32 %v90, %v89
    %v92 = vadd.f32 %v84, %v91
    %s93 = sld [smem:[#allocation2 + $0x9]]
    %v94 = vstv %s93
    %v95 = vadd.f32 %v92, %v94
    %vm96 = vcmp.gt.f32.partialorder %v95, 0.0
    %v97 = vmul.f32 %v95, 0.01
    %v98 = vsel %vm96, %v95, %v97
    %99 = vst [vmem:[#allocation5] sm:$0xff] %v98
    // Predicated region
    $region14: #{downsample_forward.1} parent=1 // pred_check
      _
    $region15: #{downsample_forward.1} parent=1 // pred_check_branch
      %101 = sbr.rel (0) target = $region17
    $region16: #{downsample_forward.1} parent=1 // pred_region
      %s103 = ssub.s32 128, 128
      %104 = vsyncadd [#allocation3], %s103
      %s106 = sshll.u32 [#allocation5], 4
      %s107 = int_to_ptr.vmem [resolvable:$true] %s106
      %109 = dma.vmem_to_hbm [thread:$0]  %s107, 128, %s2, [#allocation3]
    $region17: #{downsample_forward.1} parent=1 // pred_fallthru
      _
    // Predicated region
    $region18: #{downsample_forward.1} parent=1 // pred_check
      _
    $region19: #{downsample_forward.1} parent=1 // pred_check_branch
      %111 = sbr.rel (0) target = $region21
    $region20: #{downsample_forward.1} parent=1 // pred_region
      %112 = dma.done [#allocation3], 128
    $region21: #{downsample_forward.1} parent=1 // pred_fallthru
      _
    %113 = vsyncpa [#allocation3], 1
    %114 = vsyncpa [#allocation4], 1

</llo_original>
